<compile_context>
chip_gen: v6e
topology: v6e:2x2x1
jax: 0.10.0
libtpu: 0.0.40
codegen_flags: <defaults>
</compile_context>

<pallas_src>
import functools

import jax
import jax.numpy as jnp
from jax import lax
from jax.experimental import pallas as pl
from jax.experimental.pallas import tpu as pltpu


def _layer_norm_noaffine(x, eps=1e-5):
    # Normalization only; gamma/beta are folded into the downstream projection.
    mu = jnp.mean(x, axis=-1, keepdims=True)
    var = jnp.mean((x - mu) ** 2, axis=-1, keepdims=True)
    return (x - mu) * lax.rsqrt(var + eps)


def _prenorm_qkv_kernel(
    q_ref, k_ref, v_ref, vec_ref, wqkv_ref, wo_ref, out_ref,
    *, embed_dim, use_bf16_matmul, eps=1e-5,
):
    Bb, Lq, D = q_ref.shape
    _, Lkv, _ = k_ref.shape
    E = embed_dim

    def mm(a, b):
        # Optionally feed the MXU bf16 operands (f32 accumulation) -- worthwhile
        # at production L/D on v6e/v7x; irrelevant at these toy shapes.
        if use_bf16_matmul:
            a = a.astype(jnp.bfloat16)
            b = b.astype(jnp.bfloat16)
        return jnp.dot(a, b, preferred_element_type=jnp.float32)

    # Packed bias rows: [bq_fused, bk_fused, bv_fused, bo], padded to width P.
    # Static slices of the ref -> free views.
    bq = vec_ref[0:1, :E]
    bk = vec_ref[1:2, :E]
    bv = vec_ref[2:3, :E]
    bo = vec_ref[3:4, :D]

    # Packed projection weights (LN gamma and softmax scaling already folded in).
    wq = wqkv_ref[:, 0 * E:1 * E]
    wk = wqkv_ref[:, 1 * E:2 * E]
    wv = wqkv_ref[:, 2 * E:3 * E]

    # LayerNorm (normalization only) over the whole batch block as (Bb*L, D) slabs.
    xq = _layer_norm_noaffine(q_ref[...].reshape(Bb * Lq, D).astype(jnp.float32), eps)
    xk = _layer_norm_noaffine(k_ref[...].reshape(Bb * Lkv, D).astype(jnp.float32), eps)
    xv = _layer_norm_noaffine(v_ref[...].reshape(Bb * Lkv, D).astype(jnp.float32), eps)

    # Projections for the whole batch block.  Q already carries the 1/sqrt(E)
    # scaling (folded into wq/bq at prepare time).
    qp = mm(xq, wq) + bq                               # (Bb*Lq,  E)
    kp = mm(xk, wk) + bk                               # (Bb*Lkv, E)
    vp = mm(xv, wv) + bv                               # (Bb*Lkv, E)

    # Scaled dot-product attention per batch element.  Bb is a small static
    # count, so this Python loop is a full static unroll with static slices.
    ctx = []
    for i in range(Bb):
        qi = qp[i * Lq:(i + 1) * Lq]
        ki = kp[i * Lkv:(i + 1) * Lkv]
        vi = vp[i * Lkv:(i + 1) * Lkv]
        # Contract on E directly (no explicit k.T materialization).
        s = lax.dot_general(qi, ki, (((1,), (1,)), ((), ())),
                            preferred_element_type=jnp.float32)
        s = s - jnp.max(s, axis=-1, keepdims=True)
        p = jnp.exp(s)
        p = p * pl.reciprocal(jnp.sum(p, axis=-1, keepdims=True), approx=True)
        ctx.append(mm(p, vi))                          # (Lq, E)
    ctx = ctx[0] if Bb == 1 else jnp.concatenate(ctx, axis=0)   # (Bb*Lq, E)

    # Output projection for the whole batch block in one matmul.
    out = mm(ctx, wo_ref[...]) + bo                    # (Bb*Lq, D)
    out_ref[...] = out.reshape(Bb, Lq, D).astype(out_ref.dtype)


def prepare_params(params, embed_dim):
    """One-time parameter prep: hoists transposes, LN-affine folding, softmax
    scaling folding and operand packing out of the hot path
    (torch nn.Linear weights are (out_features, in_features))."""
    E = embed_dim
    D = params["wq"].shape[1]
    scaling = float(E) ** (-0.5)

    def fold(g, b_ln, W, b, scale=1.0):
        # (LNraw(x)*g + b_ln) @ W^T + b == LNraw(x) @ (g[:,None]*W^T) + (b_ln@W^T + b)
        Wt = jnp.asarray(W, jnp.float32).T                      # (D, E)
        g = jnp.asarray(g, jnp.float32)
        b_ln = jnp.asarray(b_ln, jnp.float32)
        b = jnp.asarray(b, jnp.float32)
        return (g[:, None] * Wt) * scale, (b_ln @ Wt + b) * scale

    wq_f, bq_f = fold(params["lnq_g"], params["lnq_b"], params["wq"], params["bq"], scaling)
    wk_f, bk_f = fold(params["lnk_g"], params["lnk_b"], params["wk"], params["bk"])
    wv_f, bv_f = fold(params["lnv_g"], params["lnv_b"], params["wv"], params["bv"])

    w_qkv = jnp.concatenate([wq_f, wk_f, wv_f], axis=1)          # (D, 3E)
    wo = jnp.asarray(params["wo"], jnp.float32).T                # (E, D)

    P = max(D, E)

    def row(vec):
        vec = jnp.asarray(vec, jnp.float32)
        return jnp.pad(vec, (0, P - vec.shape[0]))

    vec_pack = jnp.stack([row(bq_f), row(bk_f), row(bv_f), row(params["bo"])])  # (4, P)

    return {"w_qkv": w_qkv, "wo": wo, "vec": vec_pack}


def prenorm_qkv_attention(q, k, v, prepared, embed_dim,
                          *, num_batch_blocks=None, use_bf16_matmul=False):
    """q: (B, Lq, D); k, v: (B, Lkv, D) -> (B, Lq, D)."""
    B, Lq, D = q.shape
    _, Lkv, _ = k.shape
    E = embed_dim

    if num_batch_blocks is None:
        # Keep >=2 grid steps when possible so v7x can shard them across its two
        # TensorCores; otherwise as few, large steps as possible (per-step
        # overhead ~0.35 us dominates at small shapes).
        num_batch_blocks = 2 if (B >= 2 and B % 2 == 0) else 1
    assert B % num_batch_blocks == 0, "batch must divide num_batch_blocks"
    Bb = B // num_batch_blocks
    P = prepared["vec"].shape[1]

    kernel = functools.partial(
        _prenorm_qkv_kernel,
        embed_dim=E,
        use_bf16_matmul=use_bf16_matmul,
    )

    # TODO(synk): at production Lq/Lkv/D, tile the KV axis flash-style (online
    # softmax) and set pltpu.CompilerParams(vmem_limit_bytes=...) so the working
    # set fits v7x's 64 MiB VMEM.
    return pl.pallas_call(
        kernel,
        out_shape=jax.ShapeDtypeStruct((B, Lq, D), q.dtype),
        grid_spec=pltpu.PrefetchScalarGridSpec(
            num_scalar_prefetch=0,
            grid=(num_batch_blocks,),
            in_specs=[
                pl.BlockSpec((Bb, Lq, D), lambda g: (g, 0, 0)),
                pl.BlockSpec((Bb, Lkv, D), lambda g: (g, 0, 0)),
                pl.BlockSpec((Bb, Lkv, D), lambda g: (g, 0, 0)),
                pl.BlockSpec((4, P), lambda g: (0, 0)),
                pl.BlockSpec((D, 3 * E), lambda g: (0, 0)),
                pl.BlockSpec((E, D), lambda g: (0, 0)),
            ],
            out_specs=pl.BlockSpec((Bb, Lq, D), lambda g: (g, 0, 0)),
        ),
        compiler_params=pltpu.CompilerParams(dimension_semantics=("parallel",)),
    )(q, k, v, prepared["vec"], prepared["w_qkv"], prepared["wo"])


def _reference(q, k, v, params, embed_dim):
    """Pure-JAX reference mirroring the PyTorch forward (3x LayerNorm + SDPA fn)."""
    def ln(x, g, b, eps=1e-5):
        mu = jnp.mean(x, axis=-1, keepdims=True)
        var = jnp.mean((x - mu) ** 2, axis=-1, keepdims=True)
        return (x - mu) / jnp.sqrt(var + eps) * g + b

    scaling = float(embed_dim) ** (-0.5)
    xq = ln(q, params["lnq_g"], params["lnq_b"])
    xk = ln(k, params["lnk_g"], params["lnk_b"])
    xv = ln(v, params["lnv_g"], params["lnv_b"])
    qp = xq @ params["wq"].T + params["bq"]
    kp = xk @ params["wk"].T + params["bk"]
    vp = xv @ params["wv"].T + params["bv"]
    s = jnp.einsum("bqe,bke->bqk", qp, kp) * scaling
    a = jax.nn.softmax(s, axis=-1)
    ctx = jnp.einsum("bqk,bke->bqe", a, vp)
    return ctx @ params["wo"].T + params["bo"]


if __name__ == "__main__":
    B, Lq, Lkv = 2, 8, 12
    D, E = 32, 16  # module dim (LayerNorm dim) and attention embed dim

    key = jax.random.PRNGKey(0)
    keys = jax.random.split(key, 18)

    params = {
        # Non-trivial LN affine params so the fold-into-projection path is tested.
        "lnq_g": 1.0 + 0.1 * jax.random.normal(keys[0], (D,), jnp.float32),
        "lnq_b": 0.1 * jax.random.normal(keys[1], (D,), jnp.float32),
        "lnk_g": 1.0 + 0.1 * jax.random.normal(keys[2], (D,), jnp.float32),
        "lnk_b": 0.1 * jax.random.normal(keys[3], (D,), jnp.float32),
        "lnv_g": 1.0 + 0.1 * jax.random.normal(keys[4], (D,), jnp.float32),
        "lnv_b": 0.1 * jax.random.normal(keys[5], (D,), jnp.float32),
        # torch nn.Linear convention: weight shape (out_features, in_features)
        "wq": 0.1 * jax.random.normal(keys[6], (E, D), jnp.float32),
        "bq": 0.1 * jax.random.normal(keys[7], (E,), jnp.float32),
        "wk": 0.1 * jax.random.normal(keys[8], (E, D), jnp.float32),
        "bk": 0.1 * jax.random.normal(keys[9], (E,), jnp.float32),
        "wv": 0.1 * jax.random.normal(keys[10], (E, D), jnp.float32),
        "bv": 0.1 * jax.random.normal(keys[11], (E,), jnp.float32),
        "wo": 0.1 * jax.random.normal(keys[12], (D, E), jnp.float32),
        "bo": 0.1 * jax.random.normal(keys[13], (D,), jnp.float32),
    }

    q = jax.random.normal(keys[14], (B, Lq, D), jnp.float32)
    k = jax.random.normal(keys[15], (B, Lkv, D), jnp.float32)
    v = jax.random.normal(keys[16], (B, Lkv, D), jnp.float32)

    # One-time parameter prep (transposes / LN-affine fold / packing hoisted here).
    prepared = prepare_params(params, E)

    out = prenorm_qkv_attention(q, k, v, prepared, E)
    out = jax.block_until_ready(out)

    ref = _reference(q, k, v, params, E)
    assert out.shape == (B, Lq, D)
    # Tolerance accounts for the EUP approximate reciprocal in the softmax.
    err = jnp.max(jnp.abs(out - ref))
    assert jnp.allclose(out, ref, atol=2e-3, rtol=2e-3), f"max abs err = {err}"
    print("KERNEL_OK")
</pallas_src>

<mosaic_0001>
module attributes {stable_mosaic.version = 11 : i64} {
  func.func @_prenorm_qkv_kernel(%arg0: i32, %arg1: memref<1x8x32xf32, #tpu.memory_space<vmem>>, %arg2: memref<1x12x32xf32, #tpu.memory_space<vmem>>, %arg3: memref<1x12x32xf32, #tpu.memory_space<vmem>>, %arg4: memref<4x32xf32, #tpu.memory_space<vmem>>, %arg5: memref<32x48xf32, #tpu.memory_space<vmem>>, %arg6: memref<16x32xf32, #tpu.memory_space<vmem>>, %arg7: memref<1x8x32xf32, #tpu.memory_space<vmem>>) attributes {dimension_semantics = [#tpu.dimension_semantics<parallel>], iteration_bounds = array<i64: 2>, scalar_prefetch = 0 : i64, scratch_operands = 0 : i64, tpu.core_type = #tpu.core_type<tc>, window_params = [{transform_indices = @transform_0, window_bounds = array<i64: 1, 8, 32>}, {transform_indices = @transform_1, window_bounds = array<i64: 1, 12, 32>}, {transform_indices = @transform_2, window_bounds = array<i64: 1, 12, 32>}, {pipeline_mode = #tpu.pipeline_mode<synchronous>, transform_indices = @transform_3, window_bounds = array<i64: 4, 32>}, {pipeline_mode = #tpu.pipeline_mode<synchronous>, transform_indices = @transform_4, window_bounds = array<i64: 32, 48>}, {pipeline_mode = #tpu.pipeline_mode<synchronous>, transform_indices = @transform_5, window_bounds = array<i64: 16, 32>}, {transform_indices = @transform_6, window_bounds = array<i64: 1, 8, 32>}]} {
    %c0 = arith.constant 0 : index
    %c0_0 = arith.constant 0 : index
    %0 = vector.load %arg4[%c0, %c0_0] : memref<4x32xf32, #tpu.memory_space<vmem>>, vector<1x16xf32>
    %c1 = arith.constant 1 : index
    %c0_1 = arith.constant 0 : index
    %1 = vector.load %arg4[%c1, %c0_1] : memref<4x32xf32, #tpu.memory_space<vmem>>, vector<1x16xf32>
    %c2 = arith.constant 2 : index
    %c0_2 = arith.constant 0 : index
    %2 = vector.load %arg4[%c2, %c0_2] : memref<4x32xf32, #tpu.memory_space<vmem>>, vector<1x16xf32>
    %c3 = arith.constant 3 : index
    %c0_3 = arith.constant 0 : index
    %3 = vector.load %arg4[%c3, %c0_3] : memref<4x32xf32, #tpu.memory_space<vmem>>, vector<1x32xf32>
    %c0_4 = arith.constant 0 : index
    %c0_5 = arith.constant 0 : index
    %4 = vector.load %arg5[%c0_4, %c0_5] : memref<32x48xf32, #tpu.memory_space<vmem>>, vector<32x16xf32>
    %c0_6 = arith.constant 0 : index
    %c16 = arith.constant 16 : index
    %5 = vector.load %arg5[%c0_6, %c16] : memref<32x48xf32, #tpu.memory_space<vmem>>, vector<32x16xf32>
    %c0_7 = arith.constant 0 : index
    %c32 = arith.constant 32 : index
    %6 = vector.load %arg5[%c0_7, %c32] : memref<32x48xf32, #tpu.memory_space<vmem>>, vector<32x16xf32>
    %c0_8 = arith.constant 0 : index
    %c0_9 = arith.constant 0 : index
    %c0_10 = arith.constant 0 : index
    %7 = vector.load %arg1[%c0_8, %c0_9, %c0_10] : memref<1x8x32xf32, #tpu.memory_space<vmem>>, vector<1x8x32xf32>
    %8 = vector.shape_cast %7 : vector<1x8x32xf32> to vector<8x32xf32>
    %cst = arith.constant dense<0.000000e+00> : vector<8xf32>
    %9 = vector.multi_reduction <add>, %8, %cst [1] : vector<8x32xf32> to vector<8xf32>
    %10 = vector.shape_cast %9 : vector<8xf32> to vector<8x1xf32>
    %cst_11 = arith.constant 3.200000e+01 : f32
    %11 = vector.broadcast %cst_11 : f32 to vector<8x1xf32>
    %12 = arith.divf %10, %11 : vector<8x1xf32>
    %13 = vector.broadcast %12 : vector<8x1xf32> to vector<8x32xf32>
    %14 = arith.subf %8, %13 : vector<8x32xf32>
    %15 = arith.mulf %14, %14 : vector<8x32xf32>
    %cst_12 = arith.constant dense<0.000000e+00> : vector<8xf32>
    %16 = vector.multi_reduction <add>, %15, %cst_12 [1] : vector<8x32xf32> to vector<8xf32>
    %17 = vector.shape_cast %16 : vector<8xf32> to vector<8x1xf32>
    %cst_13 = arith.constant 3.200000e+01 : f32
    %18 = vector.broadcast %cst_13 : f32 to vector<8x1xf32>
    %19 = arith.divf %17, %18 : vector<8x1xf32>
    %20 = vector.broadcast %12 : vector<8x1xf32> to vector<8x32xf32>
    %21 = arith.subf %8, %20 : vector<8x32xf32>
    %cst_14 = arith.constant 9.99999974E-6 : f32
    %22 = vector.broadcast %cst_14 : f32 to vector<8x1xf32>
    %23 = arith.addf %19, %22 : vector<8x1xf32>
    %24 = math.rsqrt %23 : vector<8x1xf32>
    %25 = vector.broadcast %24 : vector<8x1xf32> to vector<8x32xf32>
    %26 = arith.mulf %21, %25 : vector<8x32xf32>
    %c0_15 = arith.constant 0 : index
    %c0_16 = arith.constant 0 : index
    %c0_17 = arith.constant 0 : index
    %27 = vector.load %arg2[%c0_15, %c0_16, %c0_17] : memref<1x12x32xf32, #tpu.memory_space<vmem>>, vector<1x12x32xf32>
    %28 = vector.shape_cast %27 : vector<1x12x32xf32> to vector<12x32xf32>
    %cst_18 = arith.constant dense<0.000000e+00> : vector<12xf32>
    %29 = vector.multi_reduction <add>, %28, %cst_18 [1] : vector<12x32xf32> to vector<12xf32>
    %30 = vector.shape_cast %29 : vector<12xf32> to vector<12x1xf32>
    %cst_19 = arith.constant 3.200000e+01 : f32
    %31 = vector.broadcast %cst_19 : f32 to vector<12x1xf32>
    %32 = arith.divf %30, %31 : vector<12x1xf32>
    %33 = vector.broadcast %32 : vector<12x1xf32> to vector<12x32xf32>
    %34 = arith.subf %28, %33 : vector<12x32xf32>
    %35 = arith.mulf %34, %34 : vector<12x32xf32>
    %cst_20 = arith.constant dense<0.000000e+00> : vector<12xf32>
    %36 = vector.multi_reduction <add>, %35, %cst_20 [1] : vector<12x32xf32> to vector<12xf32>
    %37 = vector.shape_cast %36 : vector<12xf32> to vector<12x1xf32>
    %cst_21 = arith.constant 3.200000e+01 : f32
    %38 = vector.broadcast %cst_21 : f32 to vector<12x1xf32>
    %39 = arith.divf %37, %38 : vector<12x1xf32>
    %40 = vector.broadcast %32 : vector<12x1xf32> to vector<12x32xf32>
    %41 = arith.subf %28, %40 : vector<12x32xf32>
    %cst_22 = arith.constant 9.99999974E-6 : f32
    %42 = vector.broadcast %cst_22 : f32 to vector<12x1xf32>
    %43 = arith.addf %39, %42 : vector<12x1xf32>
    %44 = math.rsqrt %43 : vector<12x1xf32>
    %45 = vector.broadcast %44 : vector<12x1xf32> to vector<12x32xf32>
    %46 = arith.mulf %41, %45 : vector<12x32xf32>
    %c0_23 = arith.constant 0 : index
    %c0_24 = arith.constant 0 : index
    %c0_25 = arith.constant 0 : index
    %47 = vector.load %arg3[%c0_23, %c0_24, %c0_25] : memref<1x12x32xf32, #tpu.memory_space<vmem>>, vector<1x12x32xf32>
    %48 = vector.shape_cast %47 : vector<1x12x32xf32> to vector<12x32xf32>
    %cst_26 = arith.constant dense<0.000000e+00> : vector<12xf32>
    %49 = vector.multi_reduction <add>, %48, %cst_26 [1] : vector<12x32xf32> to vector<12xf32>
    %50 = vector.shape_cast %49 : vector<12xf32> to vector<12x1xf32>
    %cst_27 = arith.constant 3.200000e+01 : f32
    %51 = vector.broadcast %cst_27 : f32 to vector<12x1xf32>
    %52 = arith.divf %50, %51 : vector<12x1xf32>
    %53 = vector.broadcast %52 : vector<12x1xf32> to vector<12x32xf32>
    %54 = arith.subf %48, %53 : vector<12x32xf32>
    %55 = arith.mulf %54, %54 : vector<12x32xf32>
    %cst_28 = arith.constant dense<0.000000e+00> : vector<12xf32>
    %56 = vector.multi_reduction <add>, %55, %cst_28 [1] : vector<12x32xf32> to vector<12xf32>
    %57 = vector.shape_cast %56 : vector<12xf32> to vector<12x1xf32>
    %cst_29 = arith.constant 3.200000e+01 : f32
    %58 = vector.broadcast %cst_29 : f32 to vector<12x1xf32>
    %59 = arith.divf %57, %58 : vector<12x1xf32>
    %60 = vector.broadcast %52 : vector<12x1xf32> to vector<12x32xf32>
    %61 = arith.subf %48, %60 : vector<12x32xf32>
    %cst_30 = arith.constant 9.99999974E-6 : f32
    %62 = vector.broadcast %cst_30 : f32 to vector<12x1xf32>
    %63 = arith.addf %59, %62 : vector<12x1xf32>
    %64 = math.rsqrt %63 : vector<12x1xf32>
    %65 = vector.broadcast %64 : vector<12x1xf32> to vector<12x32xf32>
    %66 = arith.mulf %61, %65 : vector<12x32xf32>
    %cst_31 = arith.constant dense<0.000000e+00> : vector<8x16xf32>
    %67 = tpu.matmul %26, %4, %cst_31 {dimension_numbers = #tpu.dot_dimension_numbers<[1], [0], [0], [1], [0, 0, 1, 1], [], []>} : vector<8x32xf32>, vector<32x16xf32>, vector<8x16xf32> -> vector<8x16xf32>
    %68 = vector.broadcast %0 : vector<1x16xf32> to vector<8x16xf32>
    %69 = arith.addf %67, %68 : vector<8x16xf32>
    %cst_32 = arith.constant dense<0.000000e+00> : vector<12x16xf32>
    %70 = tpu.matmul %46, %5, %cst_32 {dimension_numbers = #tpu.dot_dimension_numbers<[1], [0], [0], [1], [0, 0, 1, 1], [], []>} : vector<12x32xf32>, vector<32x16xf32>, vector<12x16xf32> -> vector<12x16xf32>
    %71 = vector.broadcast %1 : vector<1x16xf32> to vector<12x16xf32>
    %72 = arith.addf %70, %71 : vector<12x16xf32>
    %cst_33 = arith.constant dense<0.000000e+00> : vector<12x16xf32>
    %73 = tpu.matmul %66, %6, %cst_33 {dimension_numbers = #tpu.dot_dimension_numbers<[1], [0], [0], [1], [0, 0, 1, 1], [], []>} : vector<12x32xf32>, vector<32x16xf32>, vector<12x16xf32> -> vector<12x16xf32>
    %74 = vector.broadcast %2 : vector<1x16xf32> to vector<12x16xf32>
    %75 = arith.addf %73, %74 : vector<12x16xf32>
    %cst_34 = arith.constant dense<0.000000e+00> : vector<8x12xf32>
    %76 = tpu.matmul %69, %72, %cst_34 {dimension_numbers = #tpu.dot_dimension_numbers<[1], [1], [0], [0], [0, 0, 1, 0], [], []>} : vector<8x16xf32>, vector<12x16xf32>, vector<8x12xf32> -> vector<8x12xf32>
    %cst_35 = arith.constant dense<0xFF800000> : vector<8xf32>
    %77 = vector.multi_reduction <maximumf>, %76, %cst_35 [1] : vector<8x12xf32> to vector<8xf32>
    %78 = vector.shape_cast %77 : vector<8xf32> to vector<8x1xf32>
    %79 = vector.broadcast %78 : vector<8x1xf32> to vector<8x12xf32>
    %80 = arith.subf %76, %79 : vector<8x12xf32>
    %81 = math.exp %80 : vector<8x12xf32>
    %cst_36 = arith.constant dense<0.000000e+00> : vector<8xf32>
    %82 = vector.multi_reduction <add>, %81, %cst_36 [1] : vector<8x12xf32> to vector<8xf32>
    %83 = vector.shape_cast %82 : vector<8xf32> to vector<8x1xf32>
    %84 = tpu.reciprocal %83 {approx = true} : vector<8x1xf32> -> vector<8x1xf32>
    %85 = vector.broadcast %84 : vector<8x1xf32> to vector<8x12xf32>
    %86 = arith.mulf %81, %85 : vector<8x12xf32>
    %cst_37 = arith.constant dense<0.000000e+00> : vector<8x16xf32>
    %87 = tpu.matmul %86, %75, %cst_37 {dimension_numbers = #tpu.dot_dimension_numbers<[1], [0], [0], [1], [0, 0, 1, 1], [], []>} : vector<8x12xf32>, vector<12x16xf32>, vector<8x16xf32> -> vector<8x16xf32>
    %c0_38 = arith.constant 0 : index
    %c0_39 = arith.constant 0 : index
    %88 = vector.load %arg6[%c0_38, %c0_39] : memref<16x32xf32, #tpu.memory_space<vmem>>, vector<16x32xf32>
    %cst_40 = arith.constant dense<0.000000e+00> : vector<8x32xf32>
    %89 = tpu.matmul %87, %88, %cst_40 {dimension_numbers = #tpu.dot_dimension_numbers<[1], [0], [0], [1], [0, 0, 1, 1], [], []>} : vector<8x16xf32>, vector<16x32xf32>, vector<8x32xf32> -> vector<8x32xf32>
    %90 = vector.broadcast %3 : vector<1x32xf32> to vector<8x32xf32>
    %91 = arith.addf %89, %90 : vector<8x32xf32>
    %92 = vector.shape_cast %91 : vector<8x32xf32> to vector<1x8x32xf32>
    %c0_41 = arith.constant 0 : index
    %c0_42 = arith.constant 0 : index
    %c0_43 = arith.constant 0 : index
    %93 = vector.load %arg7[%c0_41, %c0_42, %c0_43] : memref<1x8x32xf32, #tpu.memory_space<vmem>>, vector<1x8x32xf32>
    tpu.vector_store %arg7[%c0_41, %c0_42, %c0_43], %92 {strides = array<i32>} : memref<1x8x32xf32, #tpu.memory_space<vmem>>, vector<1x8x32xf32>,
    return
  }
  func.func @transform_0(%arg0: i32) -> (i32, i32, i32) {
    %c0_i32 = arith.constant 0 : i32
    %c0_i32_0 = arith.constant 0 : i32
    %c0_i32_1 = arith.constant 0 : i32
    return %arg0, %c0_i32, %c0_i32_0 : i32, i32, i32
  }
  func.func @transform_1(%arg0: i32) -> (i32, i32, i32) {
    %c0_i32 = arith.constant 0 : i32
    %c0_i32_0 = arith.constant 0 : i32
    %c0_i32_1 = arith.constant 0 : i32
    return %arg0, %c0_i32, %c0_i32_0 : i32, i32, i32
  }
  func.func @transform_2(%arg0: i32) -> (i32, i32, i32) {
    %c0_i32 = arith.constant 0 : i32
    %c0_i32_0 = arith.constant 0 : i32
    %c0_i32_1 = arith.constant 0 : i32
    return %arg0, %c0_i32, %c0_i32_0 : i32, i32, i32
  }
  func.func @transform_3(%arg0: i32) -> (i32, i32) {
    %c0_i32 = arith.constant 0 : i32
    %c0_i32_0 = arith.constant 0 : i32
    %c0_i32_1 = arith.constant 0 : i32
    return %c0_i32, %c0_i32_0 : i32, i32
  }
  func.func @transform_4(%arg0: i32) -> (i32, i32) {
    %c0_i32 = arith.constant 0 : i32
    %c0_i32_0 = arith.constant 0 : i32
    %c0_i32_1 = arith.constant 0 : i32
    return %c0_i32, %c0_i32_0 : i32, i32
  }
  func.func @transform_5(%arg0: i32) -> (i32, i32) {
    %c0_i32 = arith.constant 0 : i32
    %c0_i32_0 = arith.constant 0 : i32
    %c0_i32_1 = arith.constant 0 : i32
    return %c0_i32, %c0_i32_0 : i32, i32
  }
  func.func @transform_6(%arg0: i32) -> (i32, i32, i32) {
    %c0_i32 = arith.constant 0 : i32
    %c0_i32_0 = arith.constant 0 : i32
    %c0_i32_1 = arith.constant 0 : i32
    return %arg0, %c0_i32, %c0_i32_0 : i32, i32, i32
  }
}

</mosaic_0001>

<llo_original>
// kernel: tpu_custom_call.1
$region0: #{tpu_custom_call.1}
  #allocation0 [shape = 'u32[]', space=smem, size = 0x4, offset = 0x4, fixed_abs, tag = 'smem constant byte address 0x4 - core index']
  #allocation1 [shape = 'u32[144,128]{1,0:T(1,128)}', space=vmem, size = 0x12000, scoped, tag = 'internal scratch']
  %s0 = inlined_call_operand.vmem [shape: f32[2,8,32], index: 0, kind: input, shape index: {}]
  %s1 = inlined_call_operand.vmem [shape: f32[2,12,32], index: 1, kind: input, shape index: {}]
  %s2 = inlined_call_operand.vmem [shape: f32[2,12,32], index: 2, kind: input, shape index: {}]
  %s3 = inlined_call_operand.vmem [shape: f32[4,32], index: 3, kind: input, shape index: {}]
  %s4 = inlined_call_operand.vmem [shape: f32[32,48], index: 4, kind: input, shape index: {}]
  %s5 = inlined_call_operand.vmem [shape: f32[16,32], index: 5, kind: input, shape index: {}]
  %s6 = inlined_call_operand.hbm [shape: f32[2,8,32], index: 6, kind: output, shape index: {}]
  %s7 = sld [smem:[#allocation0]]
  $region57: #{tpu_custom_call.1} parent=0
    _
  %s9 = ssub.s32 1, %s7
  %s10 = scalar_select 0, %s9, %s7
  $region1: #{tpu_custom_call.1} parent=0
    #allocation2 [shape = 'u8[8192]{0}', space=vmem, size = 0x2000, scoped, tag = 'output window, operand 0']
    #allocation3 [shape = 's32[2]{0}', space=sflag, size = 0x8, scoped, tag = 'scoped memory for tpu_custom_call.1']
    %11 = vsyncpa [#allocation3], 0
    %s12 = scalar_lea.sflag [#allocation3], 1
    %13 = vsyncpa %s12, 0
    loop: start=0, step=1, limit=4
    $region2: #{tpu_custom_call.1} parent=1 // loop_pre_header
      _
    $region3: #{tpu_custom_call.1} parent=1 // loop_header
      %s15 = sphi 0, %s19
      %p16 = scmp.ge.s32.totalorder %s15, 4
      %s25 = sphi 0, %s27
      %s28 = sphi 0, %s25
      %s29 = sphi 0, %s28
      %s45 = sphi 0, %s29
      %s51 = sphi 0, %s53
      %s54 = sphi 0, %s51
      %s55 = sphi 0, %s54
      %s71 = sphi 0, %s55
      %s77 = sphi 0, %s79
      %s80 = sphi 0, %s77
      %s81 = sphi 0, %s80
      %s97 = sphi 0, %s81
      %s101 = sphi 0, %s101
      %s103 = sphi 0, %s101
      %s104 = sphi 0, %s103
      %s118 = sphi 0, %s104
      %s122 = sphi 0, %s122
      %s124 = sphi 0, %s122
      %s125 = sphi 0, %s124
      %s139 = sphi 0, %s125
      %s143 = sphi 0, %s143
      %s145 = sphi 0, %s143
      %s146 = sphi 0, %s145
      %s160 = sphi 0, %s146
      %s166 = sphi 0, %s168
      %s169 = sphi 0, %s166
      %s170 = sphi 0, %s169
      %s186 = sphi 0, %s170
    $region4: #{tpu_custom_call.1} parent=1 // loop_header_branch
      %18 = sbr.rel (%p16) target = $region8
    $region5: #{tpu_custom_call.1} parent=1 // loop_body
      %s20 = ssub.s32 %s15, 1
      %s21 = ssub.s32 %s15, 2
      %s22 = sadd.s32 %s15, 1
      %s23 = ssub.s32 %s15, %s22
      %p24 = scmp.eq.s32.totalorder %s23, 0
      %s26 = sadd.s32 %s25, 1
      %s27 = scalar_select %p24, %s25, %s26
      %p30 = pneg %p24
      %p31 = scmp.eq.s32.totalorder %s15, 1
      %p32 = por %p30, %p31
      %p33 = scmp.ne.s32.totalorder %s25, %s28
      %p34 = scmp.eq.s32.totalorder %s15, 0
      %p35 = por %p33, %p34
      %p36 = scmp.ne.s32.totalorder %s25, %s28
      %p37 = scmp.eq.s32.totalorder %s20, 1
      %p38 = por %p36, %p37
      %p39 = scmp.ne.s32.totalorder %s28, %s29
      %p40 = scmp.eq.s32.totalorder %s20, 0
      %p41 = por %p39, %p40
      %p42 = scmp.ne.s32.totalorder %s28, %s29
      %p43 = scmp.eq.s32.totalorder %s21, 1
      %p44 = por %p42, %p43
      %p46 = scmp.ne.s32.totalorder %s29, %s45
      %p47 = scmp.eq.s32.totalorder %s21, 0
      %p48 = por %p46, %p47
      %s49 = ssub.s32 %s15, %s22
      %p50 = scmp.eq.s32.totalorder %s49, 0
      %s52 = sadd.s32 %s51, 1
      %s53 = scalar_select %p50, %s51, %s52
      %p56 = pneg %p50
      %p57 = scmp.eq.s32.totalorder %s15, 1
      %p58 = por %p56, %p57
      %p59 = scmp.ne.s32.totalorder %s51, %s54
      %p60 = scmp.eq.s32.totalorder %s15, 0
      %p61 = por %p59, %p60
      %p62 = scmp.ne.s32.totalorder %s51, %s54
      %p63 = scmp.eq.s32.totalorder %s20, 1
      %p64 = por %p62, %p63
      %p65 = scmp.ne.s32.totalorder %s54, %s55
      %p66 = scmp.eq.s32.totalorder %s20, 0
      %p67 = por %p65, %p66
      %p68 = scmp.ne.s32.totalorder %s54, %s55
      %p69 = scmp.eq.s32.totalorder %s21, 1
      %p70 = por %p68, %p69
      %p72 = scmp.ne.s32.totalorder %s55, %s71
      %p73 = scmp.eq.s32.totalorder %s21, 0
      %p74 = por %p72, %p73
      %s75 = ssub.s32 %s15, %s22
      %p76 = scmp.eq.s32.totalorder %s75, 0
      %s78 = sadd.s32 %s77, 1
      %s79 = scalar_select %p76, %s77, %s78
      %p82 = pneg %p76
      %p83 = scmp.eq.s32.totalorder %s15, 1
      %p84 = por %p82, %p83
      %p85 = scmp.ne.s32.totalorder %s77, %s80
      %p86 = scmp.eq.s32.totalorder %s15, 0
      %p87 = por %p85, %p86
      %p88 = scmp.ne.s32.totalorder %s77, %s80
      %p89 = scmp.eq.s32.totalorder %s20, 1
      %p90 = por %p88, %p89
      %p91 = scmp.ne.s32.totalorder %s80, %s81
      %p92 = scmp.eq.s32.totalorder %s20, 0
      %p93 = por %p91, %p92
      %p94 = scmp.ne.s32.totalorder %s80, %s81
      %p95 = scmp.eq.s32.totalorder %s21, 1
      %p96 = por %p94, %p95
      %p98 = scmp.ne.s32.totalorder %s81, %s97
      %p99 = scmp.eq.s32.totalorder %s21, 0
      %p100 = por %p98, %p99
      %s102 = sadd.s32 %s101, 1
      %p105 = scmp.eq.s32.totalorder %s15, 1
      %p106 = scmp.ne.s32.totalorder %s101, %s103
      %p107 = scmp.eq.s32.totalorder %s15, 0
      %p108 = por %p106, %p107
      %p109 = scmp.ne.s32.totalorder %s101, %s103
      %p110 = scmp.eq.s32.totalorder %s20, 1
      %p111 = por %p109, %p110
      %p112 = scmp.ne.s32.totalorder %s103, %s104
      %p113 = scmp.eq.s32.totalorder %s20, 0
      %p114 = por %p112, %p113
      %p115 = scmp.ne.s32.totalorder %s103, %s104
      %p116 = scmp.eq.s32.totalorder %s21, 1
      %p117 = por %p115, %p116
      %p119 = scmp.ne.s32.totalorder %s104, %s118
      %p120 = scmp.eq.s32.totalorder %s21, 0
      %p121 = por %p119, %p120
      %s123 = sadd.s32 %s122, 1
      %p126 = scmp.eq.s32.totalorder %s15, 1
      %p127 = scmp.ne.s32.totalorder %s122, %s124
      %p128 = scmp.eq.s32.totalorder %s15, 0
      %p129 = por %p127, %p128
      %p130 = scmp.ne.s32.totalorder %s122, %s124
      %p131 = scmp.eq.s32.totalorder %s20, 1
      %p132 = por %p130, %p131
      %p133 = scmp.ne.s32.totalorder %s124, %s125
      %p134 = scmp.eq.s32.totalorder %s20, 0
      %p135 = por %p133, %p134
      %p136 = scmp.ne.s32.totalorder %s124, %s125
      %p137 = scmp.eq.s32.totalorder %s21, 1
      %p138 = por %p136, %p137
      %p140 = scmp.ne.s32.totalorder %s125, %s139
      %p141 = scmp.eq.s32.totalorder %s21, 0
      %p142 = por %p140, %p141
      %s144 = sadd.s32 %s143, 1
      %p147 = scmp.eq.s32.totalorder %s15, 1
      %p148 = scmp.ne.s32.totalorder %s143, %s145
      %p149 = scmp.eq.s32.totalorder %s15, 0
      %p150 = por %p148, %p149
      %p151 = scmp.ne.s32.totalorder %s143, %s145
      %p152 = scmp.eq.s32.totalorder %s20, 1
      %p153 = por %p151, %p152
      %p154 = scmp.ne.s32.totalorder %s145, %s146
      %p155 = scmp.eq.s32.totalorder %s20, 0
      %p156 = por %p154, %p155
      %p157 = scmp.ne.s32.totalorder %s145, %s146
      %p158 = scmp.eq.s32.totalorder %s21, 1
      %p159 = por %p157, %p158
      %p161 = scmp.ne.s32.totalorder %s146, %s160
      %p162 = scmp.eq.s32.totalorder %s21, 0
      %p163 = por %p161, %p162
      %s164 = ssub.s32 %s15, %s22
      %p165 = scmp.eq.s32.totalorder %s164, 0
      %s167 = sadd.s32 %s166, 1
      %s168 = scalar_select %p165, %s166, %s167
      %p171 = pneg %p165
      %p172 = scmp.eq.s32.totalorder %s15, 1
      %p173 = por %p171, %p172
      %p174 = scmp.ne.s32.totalorder %s166, %s169
      %p175 = scmp.eq.s32.totalorder %s15, 0
      %p176 = por %p174, %p175
      %p177 = scmp.ne.s32.totalorder %s166, %s169
      %p178 = scmp.eq.s32.totalorder %s20, 1
      %p179 = por %p177, %p178
      %p180 = scmp.ne.s32.totalorder %s169, %s170
      %p181 = scmp.eq.s32.totalorder %s20, 0
      %p182 = por %p180, %p181
      %p183 = scmp.ne.s32.totalorder %s169, %s170
      %p184 = scmp.eq.s32.totalorder %s21, 1
      %p185 = por %p183, %p184
      %p187 = scmp.ne.s32.totalorder %s170, %s186
      %p188 = scmp.eq.s32.totalorder %s21, 0
      %p189 = por %p187, %p188
      %p190 = scmp.le.s32.totalorder 1, %s15
      %p191 = scmp.lt.s32.totalorder %s15, 3
      %p192 = pnand %p190, %p191
      %p193 = pneg %p192
      // Predicated region
      $region9: #{tpu_custom_call.1} parent=5 // pred_check
        _
      $region10: #{tpu_custom_call.1} parent=5 // pred_check_branch
        %195 = sbr.rel (%p192) target = $region12
      $region11: #{tpu_custom_call.1} parent=5 // pred_region
        %s196 = ssub.s32 %s15, 1
        // Predicated region
        $region13: #{tpu_custom_call.1} parent=11 // pred_check
          %p197 = pneg %p114
        $region14: #{tpu_custom_call.1} parent=11 // pred_check_branch
          %199 = sbr.rel (%p197) target = $region16
        $region15: #{tpu_custom_call.1} parent=11 // pred_region
          _
        $region16: #{tpu_custom_call.1} parent=11 // pred_fallthru
          _
        // Predicated region
        $region17: #{tpu_custom_call.1} parent=11 // pred_check
          %p200 = pneg %p135
        $region18: #{tpu_custom_call.1} parent=11 // pred_check_branch
          %202 = sbr.rel (%p200) target = $region20
        $region19: #{tpu_custom_call.1} parent=11 // pred_region
          _
        $region20: #{tpu_custom_call.1} parent=11 // pred_fallthru
          _
        // Predicated region
        $region21: #{tpu_custom_call.1} parent=11 // pred_check
          %p203 = pneg %p156
        $region22: #{tpu_custom_call.1} parent=11 // pred_check_branch
          %205 = sbr.rel (%p203) target = $region24
        $region23: #{tpu_custom_call.1} parent=11 // pred_region
          _
        $region24: #{tpu_custom_call.1} parent=11 // pred_fallthru
          _
      $region12: #{tpu_custom_call.1} parent=5 // pred_fallthru
        _
      %p206 = scmp.lt.s32.totalorder %s15, 2
      // Predicated region
      $region25: #{tpu_custom_call.1} parent=5 // pred_check
        %p207 = pneg %p206
      $region26: #{tpu_custom_call.1} parent=5 // pred_check_branch
        %209 = sbr.rel (%p207) target = $region28
      $region27: #{tpu_custom_call.1} parent=5 // pred_region
        // Predicated region
        $region29: #{tpu_custom_call.1} parent=27 // pred_check
          %p210 = pneg %p35
        $region30: #{tpu_custom_call.1} parent=27 // pred_check_branch
          %212 = sbr.rel (%p210) target = $region32
        $region31: #{tpu_custom_call.1} parent=27 // pred_region
          %p213 = scmp.lt.s32.totalorder %s15, 1
          %s214 = scalar_select %p213, %s15, 1
          %s215 = smul.addr %s214, 8
          %s216 = scalar_lea.vmem %s0, %s215
        $region32: #{tpu_custom_call.1} parent=27 // pred_fallthru
          _
        // Predicated region
        $region33: #{tpu_custom_call.1} parent=27 // pred_check
          %p217 = pneg %p61
        $region34: #{tpu_custom_call.1} parent=27 // pred_check_branch
          %219 = sbr.rel (%p217) target = $region36
        $region35: #{tpu_custom_call.1} parent=27 // pred_region
          %p220 = scmp.lt.s32.totalorder %s15, 1
          %s221 = scalar_select %p220, %s15, 1
          %s222 = smul.addr %s221, 2
          %s223 = smul.addr %s222, 8
          %s224 = scalar_lea.vmem %s1, %s223
        $region36: #{tpu_custom_call.1} parent=27 // pred_fallthru
          _
        // Predicated region
        $region37: #{tpu_custom_call.1} parent=27 // pred_check
          %p225 = pneg %p87
        $region38: #{tpu_custom_call.1} parent=27 // pred_check_branch
          %227 = sbr.rel (%p225) target = $region40
        $region39: #{tpu_custom_call.1} parent=27 // pred_region
          %p228 = scmp.lt.s32.totalorder %s15, 1
          %s229 = scalar_select %p228, %s15, 1
          %s230 = smul.addr %s229, 2
          %s231 = smul.addr %s230, 8
          %s232 = scalar_lea.vmem %s2, %s231
        $region40: #{tpu_custom_call.1} parent=27 // pred_fallthru
          _
      $region28: #{tpu_custom_call.1} parent=5 // pred_fallthru
        _
      %p233 = scmp.le.s32.totalorder 1, %s15
      %p234 = scmp.lt.s32.totalorder %s15, 3
      %p235 = pnand %p233, %p234
      %p236 = pneg %p235
      // Predicated region
      $region41: #{tpu_custom_call.1} parent=5 // pred_check
        _
      $region42: #{tpu_custom_call.1} parent=5 // pred_check_branch
        %238 = sbr.rel (%p235) target = $region44
      $region43: #{tpu_custom_call.1} parent=5 // pred_region
        %s239 = ssub.s32 %s15, 1
        %p240 = scmp.lt.s32.totalorder %s20, 1
        %s241 = scalar_select %p240, %s20, 1
        %s242 = smul.addr %s241, 8
        %s243 = scalar_lea.vmem %s0, %s242
        %p244 = pneg %p41
        %p245 = pneg %p38
        %p246 = scmp.lt.s32.totalorder %s20, 1
        %s247 = scalar_select %p246, %s20, 1
        %s248 = smul.addr %s247, 2
        %s249 = smul.addr %s248, 8
        %s250 = scalar_lea.vmem %s1, %s249
        %p251 = pneg %p67
        %p252 = pneg %p64
        %p253 = scmp.lt.s32.totalorder %s20, 1
        %s254 = scalar_select %p253, %s20, 1
        %s255 = smul.addr %s254, 2
        %s256 = smul.addr %s255, 8
        %s257 = scalar_lea.vmem %s2, %s256
        %p258 = pneg %p93
        %p259 = pneg %p90
        %p260 = pneg %p114
        %p261 = pneg %p111
        %p262 = pneg %p135
        %p263 = pneg %p132
        %p264 = pneg %p156
        %p265 = pneg %p153
        %p266 = pneg %p182
        %p267 = pneg %p179
        %s268 = sand.u32 %s169, 1
        %s269 = scalar_lea.sflag [#allocation3], %s268
        %s270 = sand.u32 %s169, 1
        %s271 = smul.addr %s270, 8
        %s272 = scalar_lea.vmem [#allocation2], %s271
        %p273 = scmp.lt.s32.totalorder %s20, 1
        %s274 = scalar_select %p273, %s20, 1
        %s275 = smul.addr %s274, 8
        %s276 = scalar_lea.vmem %s0, %s275
        %p277 = scmp.lt.s32.totalorder %s20, 1
        %s278 = scalar_select %p277, %s20, 1
        %s279 = smul.addr %s278, 2
        %s280 = smul.addr %s279, 8
        %s281 = scalar_lea.vmem %s1, %s280
        %p282 = scmp.lt.s32.totalorder %s20, 1
        %s283 = scalar_select %p282, %s20, 1
        %s284 = smul.addr %s283, 2
        %s285 = smul.addr %s284, 8
        %s286 = scalar_lea.vmem %s2, %s285
        %v287 = vld [vmem:[%s3] sm:$0x1]
        %v288 = vld [vmem:[%s3 + $0x1] sm:$0x1]
        %v289 = vld [vmem:[%s3 + $0x2] sm:$0x1]
        %v290 = vld [vmem:[%s3 + $0x3] sm:$0x1]
        %v291 = vld [vmem:[%s4] sm:$0xff]
        %v292 = vld [vmem:[%s4 + $0x8] sm:$0xff]
        %v293 = vld [vmem:[%s4 + $0x10] sm:$0xff]
        %v294 = vld [vmem:[%s4 + $0x18] sm:$0xff]
        %v295 = vld [vmem:[%s276] sm:$0xff]
        %vm296 = vcmask 261120
        %v297 = vsel %vm296, %v295, 0.0
        %298 = vadd.xlane.f32.xlu0 %v297
        %v299 = vpop.xlane.xlu0 %298
        %v300 = vrcp.pop 32.0
        %v301 = vmul.f32 %v299, %v300
        %v302 = vsub.f32 %v295, %v301
        %v303 = vmul.f32 %v302, %v302
        %v304 = vsel %vm296, %v303, 0.0
        %305 = vadd.xlane.f32.xlu0 %v304
        %v306 = vpop.xlane.xlu0 %305
        %v307 = vmul.f32 %v306, %v300
        %v308 = vadd.f32 %v307, 1e-05
        %v309 = vrsqrt.pop %v308
        %v310 = vmul.f32 %v302, %v309
        %v311 = vld [vmem:[%s281] sm:$0xff]
        %v312 = vld [vmem:[%s281 + $0x8] sm:$0xf]
        %v313 = vsel %vm296, %v311, 0.0
        %314 = vadd.xlane.f32.xlu0 %v313
        %v315 = vpop.xlane.xlu0 %314
        %vm316 = vcmask 257024
        %v317 = vsel %vm316, %v312, 0.0
        %318 = vadd.xlane.f32.xlu0 %v317
        %v319 = vpop.xlane.xlu0 %318
        %v320 = vmul.f32 %v315, %v300
        %v321 = vmul.f32 %v319, %v300
        %v322 = vsub.f32 %v311, %v320
        %v323 = vsub.f32 %v312, %v321
        %v324 = vmul.f32 %v322, %v322
        %v325 = vmul.f32 %v323, %v323
        %v326 = vsel %vm296, %v324, 0.0
        %327 = vadd.xlane.f32.xlu0 %v326
        %v328 = vpop.xlane.xlu0 %327
        %v329 = vsel %vm316, %v325, 0.0
        %330 = vadd.xlane.f32.xlu0 %v329
        %v331 = vpop.xlane.xlu0 %330
        %v332 = vmul.f32 %v328, %v300
        %v333 = vmul.f32 %v331, %v300
        %v334 = vadd.f32 %v332, 1e-05
        %v335 = vadd.f32 %v333, 1e-05
        %v336 = vrsqrt.pop %v334
        %v337 = vrsqrt.pop %v335
        %v338 = vmul.f32 %v322, %v336
        %v339 = vmul.f32 %v323, %v337
        %v340 = vld [vmem:[%s286] sm:$0xff]
        %v341 = vld [vmem:[%s286 + $0x8] sm:$0xf]
        %v342 = vsel %vm296, %v340, 0.0
        %343 = vadd.xlane.f32.xlu0 %v342
        %v344 = vpop.xlane.xlu0 %343
        %v345 = vsel %vm316, %v341, 0.0
        %346 = vadd.xlane.f32.xlu0 %v345
        %v347 = vpop.xlane.xlu0 %346
        %v348 = vmul.f32 %v344, %v300
        %v349 = vmul.f32 %v347, %v300
        %v350 = vsub.f32 %v340, %v348
        %v351 = vsub.f32 %v341, %v349
        %v352 = vmul.f32 %v350, %v350
        %v353 = vmul.f32 %v351, %v351
        %v354 = vsel %vm296, %v352, 0.0
        %355 = vadd.xlane.f32.xlu0 %v354
        %v356 = vpop.xlane.xlu0 %355
        %v357 = vsel %vm316, %v353, 0.0
        %358 = vadd.xlane.f32.xlu0 %v357
        %v359 = vpop.xlane.xlu0 %358
        %v360 = vmul.f32 %v356, %v300
        %v361 = vmul.f32 %v359, %v300
        %v362 = vadd.f32 %v360, 1e-05
        %v363 = vadd.f32 %v361, 1e-05
        %v364 = vrsqrt.pop %v362
        %v365 = vrsqrt.pop %v363
        %v366 = vmul.f32 %v350, %v364
        %v367 = vmul.f32 %v351, %v365
        %v368 = vlaneseq
        %v369 = vshrl.u32 %v368, 7
        %v370 = vsub.s32 0, %v369
        %v371 = vrot.slane %v287, %v370
        %v373 = vsel %vm296, %v310, 0
        %375 = vmatprep.subr.mxu0 0.0
        %376 = vmatpush1.msra.mxu0 0.0
        %377 = vmatprep.subr.mxu0 0.0
        %378 = vmatpush1.msra.mxu0 0.0
        %379 = vmatprep.subr.mxu0 0.0
        %380 = vmatpush1.msra.mxu0 0.0
        %381 = vmatprep.subr.mxu0 0.0
        %382 = vmatpush1.msra.mxu0 0.0
        %383 = vmatprep.subr.mxu0 0.0
        %384 = vmatpush1.msra.mxu0 0.0
        %385 = vmatprep.subr.mxu0 0.0
        %386 = vmatpush1.msra.mxu0 0.0
        %387 = vmatprep.subr.mxu0 0.0
        %388 = vmatpush1.msra.mxu0 0.0
        %389 = vmatprep.subr.mxu0 0.0
        %390 = vmatpush1.msra.mxu0 0.0
        %391 = vmatprep.subr.mxu0 0.0
        %392 = vmatpush1.msra.mxu0 0.0
        %393 = vmatprep.subr.mxu0 0.0
        %394 = vmatpush1.msra.mxu0 0.0
        %395 = vmatprep.subr.mxu0 0.0
        %396 = vmatpush1.msra.mxu0 0.0
        %397 = vmatprep.subr.mxu0 0.0
        %398 = vmatpush1.msra.mxu0 0.0
        %399 = vmatprep.subr.mxu0 0.0
        %400 = vmatpush1.msra.mxu0 %v294
        %401 = vmatprep.subr.mxu0 0.0
        %402 = vmatpush1.msra.mxu0 %v293
        %403 = vmatprep.subr.mxu0 0.0
        %404 = vmatpush1.msra.mxu0 %v292
        %405 = vmatprep.subr.mxu0 0.0
        %406 = vmatpush1.msra.mxu0 %v291
        %407 = vmatprep.subr.mxu0 0.0
        %408 = vmatpush2.msra.mxu0 0.0
        %409 = vmatprep.subr.mxu0 0.0
        %410 = vmatpush2.msra.mxu0 0.0
        %411 = vmatprep.subr.mxu0 0.0
        %412 = vmatpush2.msra.mxu0 0.0
        %413 = vmatprep.subr.mxu0 0.0
        %414 = vmatpush2.msra.mxu0 0.0
        %415 = vmatprep.subr.mxu0 0.0
        %416 = vmatpush2.msra.mxu0 0.0
        %417 = vmatprep.subr.mxu0 0.0
        %418 = vmatpush2.msra.mxu0 0.0
        %419 = vmatprep.subr.mxu0 0.0
        %420 = vmatpush2.msra.mxu0 0.0
        %421 = vmatprep.subr.mxu0 0.0
        %422 = vmatpush2.msra.mxu0 0.0
        %423 = vmatprep.subr.mxu0 0.0
        %424 = vmatpush2.msra.mxu0 0.0
        %425 = vmatprep.subr.mxu0 0.0
        %426 = vmatpush2.msra.mxu0 0.0
        %427 = vmatprep.subr.mxu0 0.0
        %428 = vmatpush2.msra.mxu0 0.0
        %429 = vmatprep.subr.mxu0 0.0
        %430 = vmatpush2.msra.mxu0 0.0
        %431 = vmatprep.subr.mxu0 0.0
        %432 = vmatpush2.msra.mxu0 0.0
        %433 = vmatprep.subr.mxu0 0.0
        %434 = vmatpush2.msra.mxu0 0.0
        %435 = vmatprep.subr.mxu0 0.0
        %436 = vmatpush2.msra.mxu0 0.0
        %437 = vmatprep.subr.mxu0 0.0
        %438 = vmatpush2.msra.mxu0 0.0
        %439 = vmatprep.mubr.f32.mxu0 0.0
        %440 = vmatmul.mubr.f32.gmra.mxu0 %v373
        %v441 = vpop.f32.mrf.mxu0
        %v442 = vadd.f32 %v371, %v441
        %v443 = vpop.f32.mrf.mxu0
        %444 = vdwg.mxu0
        %v445 = vlaneseq
        %v446 = vshrl.u32 %v445, 7
        %v447 = vsub.s32 0, %v446
        %v448 = vrot.slane %v288, %v447
        %453 = vrot.lane.b32.xlu0 %v291, 112
        %v454 = vpop.permute.xlu0 %453
        %455 = vrot.lane.b32.xlu0 %v292, 112
        %v456 = vpop.permute.xlu0 %455
        %457 = vrot.lane.b32.xlu0 %v293, 112
        %v458 = vpop.permute.xlu0 %457
        %459 = vrot.lane.b32.xlu0 %v294, 112
        %v460 = vpop.permute.xlu0 %459
        %v466 = vsel %vm296, %v338, 0
        %v469 = vsel %vm296, %v339, 0
        %471 = vmatprep.subr.mxu0 0.0
        %472 = vmatpush1.msra.mxu0 0.0
        %473 = vmatprep.subr.mxu0 0.0
        %474 = vmatpush1.msra.mxu0 0.0
        %475 = vmatprep.subr.mxu0 0.0
        %476 = vmatpush1.msra.mxu0 0.0
        %477 = vmatprep.subr.mxu0 0.0
        %478 = vmatpush1.msra.mxu0 0.0
        %479 = vmatprep.subr.mxu0 0.0
        %480 = vmatpush1.msra.mxu0 0.0
        %481 = vmatprep.subr.mxu0 0.0
        %482 = vmatpush1.msra.mxu0 0.0
        %483 = vmatprep.subr.mxu0 0.0
        %484 = vmatpush1.msra.mxu0 0.0
        %485 = vmatprep.subr.mxu0 0.0
        %486 = vmatpush1.msra.mxu0 0.0
        %487 = vmatprep.subr.mxu0 0.0
        %488 = vmatpush1.msra.mxu0 0.0
        %489 = vmatprep.subr.mxu0 0.0
        %490 = vmatpush1.msra.mxu0 0.0
        %491 = vmatprep.subr.mxu0 0.0
        %492 = vmatpush1.msra.mxu0 0.0
        %493 = vmatprep.subr.mxu0 0.0
        %494 = vmatpush1.msra.mxu0 0.0
        %495 = vmatprep.subr.mxu0 0.0
        %496 = vmatpush1.msra.mxu0 %v460
        %497 = vmatprep.subr.mxu0 0.0
        %498 = vmatpush1.msra.mxu0 %v458
        %499 = vmatprep.subr.mxu0 0.0
        %500 = vmatpush1.msra.mxu0 %v456
        %501 = vmatprep.subr.mxu0 0.0
        %502 = vmatpush1.msra.mxu0 %v454
        %503 = vmatprep.subr.mxu0 0.0
        %504 = vmatpush2.msra.mxu0 0.0
        %505 = vmatprep.subr.mxu0 0.0
        %506 = vmatpush2.msra.mxu0 0.0
        %507 = vmatprep.subr.mxu0 0.0
        %508 = vmatpush2.msra.mxu0 0.0
        %509 = vmatprep.subr.mxu0 0.0
        %510 = vmatpush2.msra.mxu0 0.0
        %511 = vmatprep.subr.mxu0 0.0
        %512 = vmatpush2.msra.mxu0 0.0
        %513 = vmatprep.subr.mxu0 0.0
        %514 = vmatpush2.msra.mxu0 0.0
        %515 = vmatprep.subr.mxu0 0.0
        %516 = vmatpush2.msra.mxu0 0.0
        %517 = vmatprep.subr.mxu0 0.0
        %518 = vmatpush2.msra.mxu0 0.0
        %519 = vmatprep.subr.mxu0 0.0
        %520 = vmatpush2.msra.mxu0 0.0
        %521 = vmatprep.subr.mxu0 0.0
        %522 = vmatpush2.msra.mxu0 0.0
        %523 = vmatprep.subr.mxu0 0.0
        %524 = vmatpush2.msra.mxu0 0.0
        %525 = vmatprep.subr.mxu0 0.0
        %526 = vmatpush2.msra.mxu0 0.0
        %527 = vmatprep.subr.mxu0 0.0
        %528 = vmatpush2.msra.mxu0 0.0
        %529 = vmatprep.subr.mxu0 0.0
        %530 = vmatpush2.msra.mxu0 0.0
        %531 = vmatprep.subr.mxu0 0.0
        %532 = vmatpush2.msra.mxu0 0.0
        %533 = vmatprep.subr.mxu0 0.0
        %534 = vmatpush2.msra.mxu0 0.0
        %535 = vmatprep.mubr.f32.mxu0 0.0
        %536 = vmatmul.mubr.f32.gmra.mxu0 %v466
        %v537 = vpop.f32.mrf.mxu0
        %v538 = vadd.f32 %v448, %v537
        %v539 = vpop.f32.mrf.mxu0
        %540 = vmatprep.mubr.f32.mxu0 0.0
        %541 = vmatmul.mubr.f32.gmra.mxu0 %v469
        %v542 = vpop.f32.mrf.mxu0
        %v543 = vadd.f32 %v448, %v542
        %v544 = vpop.f32.mrf.mxu0
        %545 = vdwg.mxu0
        %v546 = vlaneseq
        %v547 = vshrl.u32 %v546, 7
        %v548 = vsub.s32 0, %v547
        %v549 = vrot.slane %v289, %v548
        %550 = vrot.lane.b32.xlu0 %v291, 96
        %v551 = vpop.permute.xlu0 %550
        %552 = vrot.lane.b32.xlu0 %v292, 96
        %v553 = vpop.permute.xlu0 %552
        %554 = vrot.lane.b32.xlu0 %v293, 96
        %v555 = vpop.permute.xlu0 %554
        %556 = vrot.lane.b32.xlu0 %v294, 96
        %v557 = vpop.permute.xlu0 %556
        %v563 = vsel %vm296, %v366, 0
        %v566 = vsel %vm296, %v367, 0
        %568 = vmatprep.subr.mxu0 0.0
        %569 = vmatpush1.msra.mxu0 0.0
        %570 = vmatprep.subr.mxu0 0.0
        %571 = vmatpush1.msra.mxu0 0.0
        %572 = vmatprep.subr.mxu0 0.0
        %573 = vmatpush1.msra.mxu0 0.0
        %574 = vmatprep.subr.mxu0 0.0
        %575 = vmatpush1.msra.mxu0 0.0
        %576 = vmatprep.subr.mxu0 0.0
        %577 = vmatpush1.msra.mxu0 0.0
        %578 = vmatprep.subr.mxu0 0.0
        %579 = vmatpush1.msra.mxu0 0.0
        %580 = vmatprep.subr.mxu0 0.0
        %581 = vmatpush1.msra.mxu0 0.0
        %582 = vmatprep.subr.mxu0 0.0
        %583 = vmatpush1.msra.mxu0 0.0
        %584 = vmatprep.subr.mxu0 0.0
        %585 = vmatpush1.msra.mxu0 0.0
        %586 = vmatprep.subr.mxu0 0.0
        %587 = vmatpush1.msra.mxu0 0.0
        %588 = vmatprep.subr.mxu0 0.0
        %589 = vmatpush1.msra.mxu0 0.0
        %590 = vmatprep.subr.mxu0 0.0
        %591 = vmatpush1.msra.mxu0 0.0
        %592 = vmatprep.subr.mxu0 0.0
        %593 = vmatpush1.msra.mxu0 %v557
        %594 = vmatprep.subr.mxu0 0.0
        %595 = vmatpush1.msra.mxu0 %v555
        %596 = vmatprep.subr.mxu0 0.0
        %597 = vmatpush1.msra.mxu0 %v553
        %598 = vmatprep.subr.mxu0 0.0
        %599 = vmatpush1.msra.mxu0 %v551
        %600 = vmatprep.subr.mxu0 0.0
        %601 = vmatpush2.msra.mxu0 0.0
        %602 = vmatprep.subr.mxu0 0.0
        %603 = vmatpush2.msra.mxu0 0.0
        %604 = vmatprep.subr.mxu0 0.0
        %605 = vmatpush2.msra.mxu0 0.0
        %606 = vmatprep.subr.mxu0 0.0
        %607 = vmatpush2.msra.mxu0 0.0
        %608 = vmatprep.subr.mxu0 0.0
        %609 = vmatpush2.msra.mxu0 0.0
        %610 = vmatprep.subr.mxu0 0.0
        %611 = vmatpush2.msra.mxu0 0.0
        %612 = vmatprep.subr.mxu0 0.0
        %613 = vmatpush2.msra.mxu0 0.0
        %614 = vmatprep.subr.mxu0 0.0
        %615 = vmatpush2.msra.mxu0 0.0
        %616 = vmatprep.subr.mxu0 0.0
        %617 = vmatpush2.msra.mxu0 0.0
        %618 = vmatprep.subr.mxu0 0.0
        %619 = vmatpush2.msra.mxu0 0.0
        %620 = vmatprep.subr.mxu0 0.0
        %621 = vmatpush2.msra.mxu0 0.0
        %622 = vmatprep.subr.mxu0 0.0
        %623 = vmatpush2.msra.mxu0 0.0
        %624 = vmatprep.subr.mxu0 0.0
        %625 = vmatpush2.msra.mxu0 0.0
        %626 = vmatprep.subr.mxu0 0.0
        %627 = vmatpush2.msra.mxu0 0.0
        %628 = vmatprep.subr.mxu0 0.0
        %629 = vmatpush2.msra.mxu0 0.0
        %630 = vmatprep.subr.mxu0 0.0
        %631 = vmatpush2.msra.mxu0 0.0
        %632 = vmatprep.mubr.f32.mxu0 0.0
        %633 = vmatmul.mubr.f32.gmra.mxu0 %v563
        %v634 = vpop.f32.mrf.mxu0
        %v635 = vadd.f32 %v549, %v634
        %v636 = vpop.f32.mrf.mxu0
        %637 = vmatprep.mubr.f32.mxu0 0.0
        %638 = vmatmul.mubr.f32.gmra.mxu0 %v566
        %v639 = vpop.f32.mrf.mxu0
        %v640 = vadd.f32 %v549, %v639
        %v641 = vpop.f32.mrf.mxu0
        %642 = vdwg.mxu0
        %vm643 = vcmask 130048
        %v645 = vsel %vm643, %v442, 0
        %v648 = vsel %vm643, %v538, 0
        %v651 = vsel %vm643, %v543, 0
        %653 = vmatprep.subr.mxu0 0.0
        %654 = vmatpush1.xpose.msra.mxu0 0.0
        %655 = vmatprep.subr.mxu0 0.0
        %656 = vmatpush1.xpose.msra.mxu0 0.0
        %657 = vmatprep.subr.mxu0 0.0
        %658 = vmatpush1.xpose.msra.mxu0 0.0
        %659 = vmatprep.subr.mxu0 0.0
        %660 = vmatpush1.xpose.msra.mxu0 0.0
        %661 = vmatprep.subr.mxu0 0.0
        %662 = vmatpush1.xpose.msra.mxu0 0.0
        %663 = vmatprep.subr.mxu0 0.0
        %664 = vmatpush1.xpose.msra.mxu0 0.0
        %665 = vmatprep.subr.mxu0 0.0
        %666 = vmatpush1.xpose.msra.mxu0 0.0
        %667 = vmatprep.subr.mxu0 0.0
        %668 = vmatpush1.xpose.msra.mxu0 0.0
        %669 = vmatprep.subr.mxu0 0.0
        %670 = vmatpush1.xpose.msra.mxu0 0.0
        %671 = vmatprep.subr.mxu0 0.0
        %672 = vmatpush1.xpose.msra.mxu0 0.0
        %673 = vmatprep.subr.mxu0 0.0
        %674 = vmatpush1.xpose.msra.mxu0 0.0
        %675 = vmatprep.subr.mxu0 0.0
        %676 = vmatpush1.xpose.msra.mxu0 0.0
        %677 = vmatprep.subr.mxu0 0.0
        %678 = vmatpush1.xpose.msra.mxu0 0.0
        %679 = vmatprep.subr.mxu0 0.0
        %680 = vmatpush1.xpose.msra.mxu0 0.0
        %681 = vmatprep.subr.mxu0 0.0
        %682 = vmatpush1.xpose.msra.mxu0 %v651
        %683 = vmatprep.subr.mxu0 0.0
        %684 = vmatpush1.xpose.msra.mxu0 %v648
        %685 = vmatprep.subr.mxu0 0.0
        %686 = vmatpush2.xpose.msra.mxu0 0.0
        %687 = vmatprep.subr.mxu0 0.0
        %688 = vmatpush2.xpose.msra.mxu0 0.0
        %689 = vmatprep.subr.mxu0 0.0
        %690 = vmatpush2.xpose.msra.mxu0 0.0
        %691 = vmatprep.subr.mxu0 0.0
        %692 = vmatpush2.xpose.msra.mxu0 0.0
        %693 = vmatprep.subr.mxu0 0.0
        %694 = vmatpush2.xpose.msra.mxu0 0.0
        %695 = vmatprep.subr.mxu0 0.0
        %696 = vmatpush2.xpose.msra.mxu0 0.0
        %697 = vmatprep.subr.mxu0 0.0
        %698 = vmatpush2.xpose.msra.mxu0 0.0
        %699 = vmatprep.subr.mxu0 0.0
        %700 = vmatpush2.xpose.msra.mxu0 0.0
        %701 = vmatprep.subr.mxu0 0.0
        %702 = vmatpush2.xpose.msra.mxu0 0.0
        %703 = vmatprep.subr.mxu0 0.0
        %704 = vmatpush2.xpose.msra.mxu0 0.0
        %705 = vmatprep.subr.mxu0 0.0
        %706 = vmatpush2.xpose.msra.mxu0 0.0
        %707 = vmatprep.subr.mxu0 0.0
        %708 = vmatpush2.xpose.msra.mxu0 0.0
        %709 = vmatprep.subr.mxu0 0.0
        %710 = vmatpush2.xpose.msra.mxu0 0.0
        %711 = vmatprep.subr.mxu0 0.0
        %712 = vmatpush2.xpose.msra.mxu0 0.0
        %713 = vmatprep.subr.mxu0 0.0
        %714 = vmatpush2.xpose.msra.mxu0 0.0
        %715 = vmatprep.subr.mxu0 0.0
        %716 = vmatpush2.xpose.msra.mxu0 0.0
        %717 = vmatprep.mubr.f32.mxu0 0.0
        %718 = vmatmul.mubr.f32.gmra.mxu0 %v645
        %v719 = vpop.f32.mrf.mxu0
        %v720 = vadd.f32 0.0, %v719
        %v721 = vpop.f32.mrf.mxu0
        %722 = vdwg.mxu0
        %vm723 = vcmask 97280
        %v724 = vsel %vm723, %v720, -inf
        %725 = vmax.xlane.f32.xlu0 %v724
        %v726 = vpop.xlane.xlu0 %725
        %v727 = vsub.f32 %v720, %v726
        %v728 = vmul.f32 %v727, 1.442695
        %v729 = vpow.pop %v728
        %v730 = vsel %vm723, %v729, 0.0
        %731 = vadd.xlane.f32.xlu0 %v730
        %v732 = vpop.xlane.xlu0 %731
        %v733 = vrcp.pop %v732
        %v734 = vmul.f32 %v729, %v733
        %v736 = vsel %vm723, %v734, 0
        %vm738 = vcmask 1043456
        %v740 = vsel %vm738, %v640, 0
        %742 = vmatprep.subr.mxu0 0.0
        %743 = vmatpush1.msra.mxu0 0.0
        %744 = vmatprep.subr.mxu0 0.0
        %745 = vmatpush1.msra.mxu0 0.0
        %746 = vmatprep.subr.mxu0 0.0
        %747 = vmatpush1.msra.mxu0 0.0
        %748 = vmatprep.subr.mxu0 0.0
        %749 = vmatpush1.msra.mxu0 0.0
        %750 = vmatprep.subr.mxu0 0.0
        %751 = vmatpush1.msra.mxu0 0.0
        %752 = vmatprep.subr.mxu0 0.0
        %753 = vmatpush1.msra.mxu0 0.0
        %754 = vmatprep.subr.mxu0 0.0
        %755 = vmatpush1.msra.mxu0 0.0
        %756 = vmatprep.subr.mxu0 0.0
        %757 = vmatpush1.msra.mxu0 0.0
        %758 = vmatprep.subr.mxu0 0.0
        %759 = vmatpush1.msra.mxu0 0.0
        %760 = vmatprep.subr.mxu0 0.0
        %761 = vmatpush1.msra.mxu0 0.0
        %762 = vmatprep.subr.mxu0 0.0
        %763 = vmatpush1.msra.mxu0 0.0
        %764 = vmatprep.subr.mxu0 0.0
        %765 = vmatpush1.msra.mxu0 0.0
        %766 = vmatprep.subr.mxu0 0.0
        %767 = vmatpush1.msra.mxu0 0.0
        %768 = vmatprep.subr.mxu0 0.0
        %769 = vmatpush1.msra.mxu0 0.0
        %770 = vmatprep.subr.mxu0 0.0
        %771 = vmatpush1.msra.mxu0 %v740
        %772 = vmatprep.subr.mxu0 0.0
        %773 = vmatpush1.msra.mxu0 %v635
        %774 = vmatprep.subr.mxu0 0.0
        %775 = vmatpush2.msra.mxu0 0.0
        %776 = vmatprep.subr.mxu0 0.0
        %777 = vmatpush2.msra.mxu0 0.0
        %778 = vmatprep.subr.mxu0 0.0
        %779 = vmatpush2.msra.mxu0 0.0
        %780 = vmatprep.subr.mxu0 0.0
        %781 = vmatpush2.msra.mxu0 0.0
        %782 = vmatprep.subr.mxu0 0.0
        %783 = vmatpush2.msra.mxu0 0.0
        %784 = vmatprep.subr.mxu0 0.0
        %785 = vmatpush2.msra.mxu0 0.0
        %786 = vmatprep.subr.mxu0 0.0
        %787 = vmatpush2.msra.mxu0 0.0
        %788 = vmatprep.subr.mxu0 0.0
        %789 = vmatpush2.msra.mxu0 0.0
        %790 = vmatprep.subr.mxu0 0.0
        %791 = vmatpush2.msra.mxu0 0.0
        %792 = vmatprep.subr.mxu0 0.0
        %793 = vmatpush2.msra.mxu0 0.0
        %794 = vmatprep.subr.mxu0 0.0
        %795 = vmatpush2.msra.mxu0 0.0
        %796 = vmatprep.subr.mxu0 0.0
        %797 = vmatpush2.msra.mxu0 0.0
        %798 = vmatprep.subr.mxu0 0.0
        %799 = vmatpush2.msra.mxu0 0.0
        %800 = vmatprep.subr.mxu0 0.0
        %801 = vmatpush2.msra.mxu0 0.0
        %802 = vmatprep.subr.mxu0 0.0
        %803 = vmatpush2.msra.mxu0 0.0
        %804 = vmatprep.subr.mxu0 0.0
        %805 = vmatpush2.msra.mxu0 0.0
        %806 = vmatprep.mubr.f32.mxu0 0.0
        %807 = vmatmul.mubr.f32.gmra.mxu0 %v736
        %v808 = vpop.f32.mrf.mxu0
        %v809 = vadd.f32 0.0, %v808
        %v810 = vpop.f32.mrf.mxu0
        %811 = vdwg.mxu0
        %v812 = vld [vmem:[%s5] sm:$0xff]
        %v813 = vld [vmem:[%s5 + $0x8] sm:$0xff]
        %v814 = vlaneseq
        %v815 = vshrl.u32 %v814, 7
        %v816 = vsub.s32 0, %v815
        %v817 = vrot.slane %v290, %v816
        %v819 = vsel %vm643, %v809, 0
        %821 = vmatprep.subr.mxu0 0.0
        %822 = vmatpush1.msra.mxu0 0.0
        %823 = vmatprep.subr.mxu0 0.0
        %824 = vmatpush1.msra.mxu0 0.0
        %825 = vmatprep.subr.mxu0 0.0
        %826 = vmatpush1.msra.mxu0 0.0
        %827 = vmatprep.subr.mxu0 0.0
        %828 = vmatpush1.msra.mxu0 0.0
        %829 = vmatprep.subr.mxu0 0.0
        %830 = vmatpush1.msra.mxu0 0.0
        %831 = vmatprep.subr.mxu0 0.0
        %832 = vmatpush1.msra.mxu0 0.0
        %833 = vmatprep.subr.mxu0 0.0
        %834 = vmatpush1.msra.mxu0 0.0
        %835 = vmatprep.subr.mxu0 0.0
        %836 = vmatpush1.msra.mxu0 0.0
        %837 = vmatprep.subr.mxu0 0.0
        %838 = vmatpush1.msra.mxu0 0.0
        %839 = vmatprep.subr.mxu0 0.0
        %840 = vmatpush1.msra.mxu0 0.0
        %841 = vmatprep.subr.mxu0 0.0
        %842 = vmatpush1.msra.mxu0 0.0
        %843 = vmatprep.subr.mxu0 0.0
        %844 = vmatpush1.msra.mxu0 0.0
        %845 = vmatprep.subr.mxu0 0.0
        %846 = vmatpush1.msra.mxu0 0.0
        %847 = vmatprep.subr.mxu0 0.0
        %848 = vmatpush1.msra.mxu0 0.0
        %849 = vmatprep.subr.mxu0 0.0
        %850 = vmatpush1.msra.mxu0 %v813
        %851 = vmatprep.subr.mxu0 0.0
        %852 = vmatpush1.msra.mxu0 %v812
        %853 = vmatprep.subr.mxu0 0.0
        %854 = vmatpush2.msra.mxu0 0.0
        %855 = vmatprep.subr.mxu0 0.0
        %856 = vmatpush2.msra.mxu0 0.0
        %857 = vmatprep.subr.mxu0 0.0
        %858 = vmatpush2.msra.mxu0 0.0
        %859 = vmatprep.subr.mxu0 0.0
        %860 = vmatpush2.msra.mxu0 0.0
        %861 = vmatprep.subr.mxu0 0.0
        %862 = vmatpush2.msra.mxu0 0.0
        %863 = vmatprep.subr.mxu0 0.0
        %864 = vmatpush2.msra.mxu0 0.0
        %865 = vmatprep.subr.mxu0 0.0
        %866 = vmatpush2.msra.mxu0 0.0
        %867 = vmatprep.subr.mxu0 0.0
        %868 = vmatpush2.msra.mxu0 0.0
        %869 = vmatprep.subr.mxu0 0.0
        %870 = vmatpush2.msra.mxu0 0.0
        %871 = vmatprep.subr.mxu0 0.0
        %872 = vmatpush2.msra.mxu0 0.0
        %873 = vmatprep.subr.mxu0 0.0
        %874 = vmatpush2.msra.mxu0 0.0
        %875 = vmatprep.subr.mxu0 0.0
        %876 = vmatpush2.msra.mxu0 0.0
        %877 = vmatprep.subr.mxu0 0.0
        %878 = vmatpush2.msra.mxu0 0.0
        %879 = vmatprep.subr.mxu0 0.0
        %880 = vmatpush2.msra.mxu0 0.0
        %881 = vmatprep.subr.mxu0 0.0
        %882 = vmatpush2.msra.mxu0 0.0
        %883 = vmatprep.subr.mxu0 0.0
        %884 = vmatpush2.msra.mxu0 0.0
        %885 = vmatprep.mubr.f32.mxu0 0.0
        %886 = vmatmul.mubr.f32.gmra.mxu0 %v819
        %v887 = vpop.f32.mrf.mxu0
        %v888 = vadd.f32 %v817, %v887
        %v889 = vpop.f32.mrf.mxu0
        %890 = vdwg.mxu0
        %891 = vst.msk [vmem:[%s272] sm:$0xff] %vm296, %v888
        %s892 = sand.u32 %s169, 1
        %s893 = scalar_lea.sflag [#allocation3], %s892
        %s894 = sand.u32 %s169, 1
        %s895 = smul.addr %s894, 8
        %s896 = scalar_lea.vmem [#allocation2], %s895
        // Predicated region
        $region45: #{tpu_custom_call.1} parent=43 // pred_check
          %p897 = pneg %p179
        $region46: #{tpu_custom_call.1} parent=43 // pred_check_branch
          %899 = sbr.rel (%p897) target = $region48
        $region47: #{tpu_custom_call.1} parent=43 // pred_region
          %s901 = ssub.s32 128, 128
          %902 = vsyncadd %s893, %s901
          %s903 = smul.addr %s20, 128
          %s904 = scalar_lea.hbm %s6, %s903
          %s906 = sshll.u32 %s896, 4
          %s907 = int_to_ptr.vmem [resolvable:$true] %s906
          %909 = dma.vmem_to_hbm [thread:$0]  %s907, 128, %s904, %s893
        $region48: #{tpu_custom_call.1} parent=43 // pred_fallthru
          _
      $region44: #{tpu_custom_call.1} parent=5 // pred_fallthru
        _
      %p910 = scmp.le.s32.totalorder 2, %s15
      // Predicated region
      $region49: #{tpu_custom_call.1} parent=5 // pred_check
        %p911 = pneg %p910
      $region50: #{tpu_custom_call.1} parent=5 // pred_check_branch
        %913 = sbr.rel (%p911) target = $region52
      $region51: #{tpu_custom_call.1} parent=5 // pred_region
        %s914 = ssub.s32 %s15, 2
        // Predicated region
        $region53: #{tpu_custom_call.1} parent=51 // pred_check
          %p915 = pneg %p185
        $region54: #{tpu_custom_call.1} parent=51 // pred_check_branch
          %917 = sbr.rel (%p915) target = $region56
        $region55: #{tpu_custom_call.1} parent=51 // pred_region
          %s918 = sand.u32 %s170, 1
          %s919 = scalar_lea.sflag [#allocation3], %s918
          %s920 = sand.u32 %s170, 1
          %s921 = smul.addr %s920, 8
          %s922 = scalar_lea.vmem [#allocation2], %s921
          %923 = dma.done %s919, 128
        $region56: #{tpu_custom_call.1} parent=51 // pred_fallthru
          _
      $region52: #{tpu_custom_call.1} parent=5 // pred_fallthru
        _
    $region6: #{tpu_custom_call.1} parent=1 // loop_footer
      %s19 = sadd.s32 1, %s15
    $region7: #{tpu_custom_call.1} parent=1 // loop_footer_branch
      %14 = sbr.rel target = $region3
    $region8: #{tpu_custom_call.1} parent=1 // loop_exit
      _
    %924 = vsyncpa [#allocation3], 1
    %s925 = scalar_lea.sflag [#allocation3], 1
    %926 = vsyncpa %s925, 1

</llo_original>
